<compile_context>
chip_gen: v5e
topology: v5e:2x2
jax: 0.10.0
libtpu: 0.0.40
codegen_flags: <defaults>
</compile_context>

<pallas_src>
import functools

import jax
import jax.numpy as jnp
import numpy as np
from jax.experimental import pallas as pl
from jax.experimental.pallas import tpu as pltpu

_TARGET_STEP_BYTES = 8 << 20   # ~8 MiB of input moved per grid step (all fused
                               # tensors combined); x2 (out) x2 (double buffer)
                               # ~= 32 MiB of VMEM, under the 48 MiB limit below.
_VMEM_LIMIT_BYTES = 48 << 20   # safe on v7x (64 MiB physical), ample on v5e/v6e.


def _cdiv(a: int, b: int) -> int:
    return (a + b - 1) // b


def _round_up(x: int, m: int) -> int:
    return _cdiv(x, m) * m


def _identity_copy_kernel(*refs):
    """Pure VMEM->VMEM copy for N fused tensors (N in refs, then N out refs)."""
    n = len(refs) // 2
    for x_ref, o_ref in zip(refs[:n], refs[n:]):
        o_ref[...] = x_ref[...]


def _choose_tile_rows(rows: int, bytes_per_row_total: int) -> int:
    """Row-tile size: dtype/width-scaled, multiple of 8, >=2 grid steps if possible."""
    if rows <= 8:
        return rows  # single full-extent block (satisfies the (8,128) rule by equality)
    budget = max(8, (_TARGET_STEP_BYTES // max(bytes_per_row_total, 1)) // 8 * 8)
    half = _round_up(_cdiv(rows, 2), 8)   # ensure >= 2 parallel tiles (v7x megacore)
    return max(8, min(budget, half))


def _fused_copy_group(views_2d, rows: int):
    """One pallas_call copying all 2-D views that share the same row count."""
    n = len(views_2d)
    bytes_per_row_total = sum(v.shape[1] * v.dtype.itemsize for v in views_2d)
    tile_rows = _choose_tile_rows(rows, bytes_per_row_total)
    grid = (_cdiv(rows, tile_rows),)

    in_specs = [pl.BlockSpec((tile_rows, v.shape[1]), lambda i: (i, 0)) for v in views_2d]
    out_specs = [pl.BlockSpec((tile_rows, v.shape[1]), lambda i: (i, 0)) for v in views_2d]
    out_shape = [jax.ShapeDtypeStruct(v.shape, v.dtype) for v in views_2d]

    return pl.pallas_call(
        _identity_copy_kernel,
        out_shape=out_shape,
        grid=grid,
        in_specs=in_specs,
        out_specs=out_specs,
        input_output_aliases={i: i for i in range(n)},   # reuse input HBM buffers
        compiler_params=pltpu.CompilerParams(
            dimension_semantics=("parallel",),            # megacore-shardable row tiles
            vmem_limit_bytes=_VMEM_LIMIT_BYTES,
        ),
    )(*views_2d)


@functools.lru_cache(maxsize=None)
def _jitted_fused_identity(n_args: int):
    @functools.partial(jax.jit, donate_argnums=tuple(range(n_args)))
    def fn(*tensors):
        # Keep the TRUE last dim as the lane axis (no pad / no tail slice);
        # collapse leading dims to a row axis (free bitcast for row-major).
        views = []
        for t in tensors:
            if t.ndim >= 2:
                views.append(t.reshape(-1, t.shape[-1]))
            else:
                views.append(t.reshape(1, -1))

        # Fuse tensors that share a row count into a single pallas_call.
        groups = {}
        for idx, v in enumerate(views):
            groups.setdefault(v.shape[0], []).append(idx)

        outs = [None] * len(tensors)
        for rows, idxs in groups.items():
            res = _fused_copy_group([views[i] for i in idxs], rows)
            for j, i in enumerate(idxs):
                outs[i] = res[j].reshape(tensors[i].shape)
        return tuple(outs)

    return fn


def pallas_identity_copy(*tensors):
    """Identity pass-through of feature tensors via one fused, aliased Pallas copy."""
    if not tensors:
        return ()
    return _jitted_fused_identity(len(tensors))(*tensors)


class BaseNeckPallas:
    """JAX/Pallas mirror of the abstract PyTorch BaseNeck.

    No parameters are created in __init__ (matching the reference).  forward()
    is the identity pass-through of whichever modalities are provided and is
    a zero-copy short-circuit (the dominant optimization: zero HBM traffic).
    `materialize()` runs the optimized fused Pallas copy kernel instead, for
    cases where a fresh/donor-aliased buffer is explicitly wanted.
    """

    def __init__(self) -> None:
        # BaseNeck.__init__ registers no parameters.
        self.params = {}

    def init_weights(self) -> None:
        # weight_init only xavier-inits Conv/Linear children; the base class
        # has none, so this is a no-op (deterministic).
        return None

    def get_parameters(self, base_lr):
        return [{"params": list(self.params.values())}]

    def forward(self, video=None, audio=None):
        # Abstract base defines no transform -> identity, zero HBM traffic.
        return video, audio

    __call__ = forward

    def materialize(self, video=None, audio=None):
        """Same identity semantics, executed through the fused Pallas kernel."""
        tensors = [t for t in (video, audio) if t is not None]
        if not tensors:
            return None, None
        outs = list(pallas_identity_copy(*tensors))
        out_video = outs.pop(0) if video is not None else None
        out_audio = outs.pop(0) if audio is not None else None
        return out_video, out_audio


if __name__ == "__main__":
    key = jax.random.PRNGKey(0)
    kv, ka = jax.random.split(key)

    # Small shapes consistent with a video/audio neck: (batch, seq, hidden)
    B, T, Dv, Da = 2, 8, 32, 32
    video = jax.random.normal(kv, (B, T, Dv), dtype=jnp.float32)
    audio = jax.random.normal(ka, (B, T, Da), dtype=jnp.float32)

    # Host copies for the correctness check (inputs are donated to the kernel).
    video_np = np.asarray(video)
    audio_np = np.asarray(audio)

    neck = BaseNeckPallas()
    neck.init_weights()

    # Production path: zero-copy identity pass-through (no kernel, no HBM traffic).
    fwd_video, fwd_audio = neck(video=video, audio=audio)
    assert fwd_video is video and fwd_audio is audio

    # Pallas path: one fused, buffer-aliased, lane-dense copy kernel — run once.
    out_video, out_audio = neck.materialize(video=video, audio=audio)
    jax.block_until_ready(out_video)
    jax.block_until_ready(out_audio)

    assert out_video.shape == video_np.shape and out_video.dtype == jnp.float32
    assert out_audio.shape == audio_np.shape and out_audio.dtype == jnp.float32
    assert np.array_equal(np.asarray(out_video), video_np)
    assert np.array_equal(np.asarray(out_audio), audio_np)

    print("KERNEL_OK")
</pallas_src>

<mosaic_0001>
module attributes {stable_mosaic.version = 11 : i64} {
  func.func @_identity_copy_kernel(%arg0: i32, %arg1: memref<8x32xf32, #tpu.memory_space<vmem>>, %arg2: memref<8x32xf32, #tpu.memory_space<vmem>>, %arg3: memref<8x32xf32, #tpu.memory_space<vmem>>, %arg4: memref<8x32xf32, #tpu.memory_space<vmem>>) attributes {dimension_semantics = [#tpu.dimension_semantics<parallel>], iteration_bounds = array<i64: 2>, scalar_prefetch = 0 : i64, scratch_operands = 0 : i64, tpu.core_type = #tpu.core_type<tc>, window_params = [{transform_indices = @transform_0, window_bounds = array<i64: 8, 32>}, {transform_indices = @transform_1, window_bounds = array<i64: 8, 32>}, {transform_indices = @transform_2, window_bounds = array<i64: 8, 32>}, {transform_indices = @transform_3, window_bounds = array<i64: 8, 32>}]} {
    %c0 = arith.constant 0 : index
    %c0_0 = arith.constant 0 : index
    %0 = vector.load %arg1[%c0, %c0_0] : memref<8x32xf32, #tpu.memory_space<vmem>>, vector<8x32xf32>
    %c0_1 = arith.constant 0 : index
    %c0_2 = arith.constant 0 : index
    %1 = vector.load %arg3[%c0_1, %c0_2] : memref<8x32xf32, #tpu.memory_space<vmem>>, vector<8x32xf32>
    tpu.vector_store %arg3[%c0_1, %c0_2], %0 {strides = array<i32>} : memref<8x32xf32, #tpu.memory_space<vmem>>, vector<8x32xf32>,
    %c0_3 = arith.constant 0 : index
    %c0_4 = arith.constant 0 : index
    %2 = vector.load %arg2[%c0_3, %c0_4] : memref<8x32xf32, #tpu.memory_space<vmem>>, vector<8x32xf32>
    %c0_5 = arith.constant 0 : index
    %c0_6 = arith.constant 0 : index
    %3 = vector.load %arg4[%c0_5, %c0_6] : memref<8x32xf32, #tpu.memory_space<vmem>>, vector<8x32xf32>
    tpu.vector_store %arg4[%c0_5, %c0_6], %2 {strides = array<i32>} : memref<8x32xf32, #tpu.memory_space<vmem>>, vector<8x32xf32>,
    return
  }
  func.func @transform_0(%arg0: i32) -> (i32, i32) {
    %c0_i32 = arith.constant 0 : i32
    %c0_i32_0 = arith.constant 0 : i32
    return %arg0, %c0_i32 : i32, i32
  }
  func.func @transform_1(%arg0: i32) -> (i32, i32) {
    %c0_i32 = arith.constant 0 : i32
    %c0_i32_0 = arith.constant 0 : i32
    return %arg0, %c0_i32 : i32, i32
  }
  func.func @transform_2(%arg0: i32) -> (i32, i32) {
    %c0_i32 = arith.constant 0 : i32
    %c0_i32_0 = arith.constant 0 : i32
    return %arg0, %c0_i32 : i32, i32
  }
  func.func @transform_3(%arg0: i32) -> (i32, i32) {
    %c0_i32 = arith.constant 0 : i32
    %c0_i32_0 = arith.constant 0 : i32
    return %arg0, %c0_i32 : i32, i32
  }
}

</mosaic_0001>

<llo_original>
// kernel: fn.1
$region0: #{fn.1}
  #allocation0 [shape = 'u32[]', space=smem, size = 0x4, offset = 0x4, fixed_abs, tag = 'smem constant byte address 0x4 - core index']
  #allocation1 [shape = 'u32[72,128]{1,0:T(1,128)}', space=vmem, size = 0x9000, scoped, tag = 'internal scratch']
  %s0 = inlined_call_operand.hbm [shape: f32[16,32], index: 0, kind: input, shape index: {}, may-alias: {0,2}]
  %s1 = inlined_call_operand.hbm [shape: f32[16,32], index: 1, kind: input, shape index: {}, may-alias: {1,3}]
  %s2 = inlined_call_operand.hbm [shape: f32[16,32], index: 2, kind: output, shape index: {0}, may-alias: {0,2}]
  %s3 = inlined_call_operand.hbm [shape: f32[16,32], index: 3, kind: output, shape index: {1}, may-alias: {1,3}]
  %4 = xla_tuple %s2, %s3
  %s5 = sld [smem:[#allocation0]]
  $region57: #{fn.1} parent=0
    _
  %s7 = ssub.s32 1, %s5
  %s8 = scalar_select 0, %s7, %s5
  $region1: #{fn.1} parent=0
    #allocation2 [shape = 'u8[8192]{0}', space=vmem, size = 0x2000, scoped, tag = 'input window, operand 0']
    #allocation3 [shape = 's32[2]{0}', space=sflag, size = 0x8, scoped, tag = 'scoped memory for fn.1']
    #allocation4 [shape = 's32[2]{0}', space=sflag, size = 0x8, scoped, tag = 'scoped memory for fn.1']
    #allocation5 [shape = 'u8[8192]{0}', space=vmem, size = 0x2000, scoped, tag = 'input window, operand 1']
    #allocation6 [shape = 's32[2]{0}', space=sflag, size = 0x8, scoped, tag = 'scoped memory for fn.1']
    #allocation7 [shape = 'u8[8192]{0}', space=vmem, size = 0x2000, scoped, tag = 'output window, operand 0']
    #allocation8 [shape = 'u8[8192]{0}', space=vmem, size = 0x2000, scoped, tag = 'output window, operand 1']
    #allocation9 [shape = 's32[2]{0}', space=sflag, size = 0x8, scoped, tag = 'scoped memory for fn.1']
    %9 = vsyncpa [#allocation3], 0
    %s10 = scalar_lea.sflag [#allocation3], 1
    %11 = vsyncpa %s10, 0
    %12 = vsyncpa [#allocation6], 0
    %s13 = scalar_lea.sflag [#allocation6], 1
    %14 = vsyncpa %s13, 0
    %15 = vsyncpa [#allocation4], 0
    %s16 = scalar_lea.sflag [#allocation4], 1
    %17 = vsyncpa %s16, 0
    %18 = vsyncpa [#allocation9], 0
    %s19 = scalar_lea.sflag [#allocation9], 1
    %20 = vsyncpa %s19, 0
    loop: start=0, step=1, limit=4
    $region2: #{fn.1} parent=1 // loop_pre_header
      _
    $region3: #{fn.1} parent=1 // loop_header
      %s22 = sphi 0, %s26
      %p23 = scmp.ge.s32.totalorder %s22, 4
      %s32 = sphi 0, %s34
      %s35 = sphi 0, %s32
      %s36 = sphi 0, %s35
      %s52 = sphi 0, %s36
      %s58 = sphi 0, %s60
      %s61 = sphi 0, %s58
      %s62 = sphi 0, %s61
      %s78 = sphi 0, %s62
      %s84 = sphi 0, %s86
      %s87 = sphi 0, %s84
      %s88 = sphi 0, %s87
      %s104 = sphi 0, %s88
      %s110 = sphi 0, %s112
      %s113 = sphi 0, %s110
      %s114 = sphi 0, %s113
      %s130 = sphi 0, %s114
    $region4: #{fn.1} parent=1 // loop_header_branch
      %25 = sbr.rel (%p23) target = $region8
    $region5: #{fn.1} parent=1 // loop_body
      %s27 = ssub.s32 %s22, 1
      %s28 = ssub.s32 %s22, 2
      %s29 = sadd.s32 %s22, 1
      %s30 = ssub.s32 %s22, %s29
      %p31 = scmp.eq.s32.totalorder %s30, 0
      %s33 = sadd.s32 %s32, 1
      %s34 = scalar_select %p31, %s32, %s33
      %p37 = pneg %p31
      %p38 = scmp.eq.s32.totalorder %s22, 1
      %p39 = por %p37, %p38
      %p40 = scmp.ne.s32.totalorder %s32, %s35
      %p41 = scmp.eq.s32.totalorder %s22, 0
      %p42 = por %p40, %p41
      %p43 = scmp.ne.s32.totalorder %s32, %s35
      %p44 = scmp.eq.s32.totalorder %s27, 1
      %p45 = por %p43, %p44
      %p46 = scmp.ne.s32.totalorder %s35, %s36
      %p47 = scmp.eq.s32.totalorder %s27, 0
      %p48 = por %p46, %p47
      %p49 = scmp.ne.s32.totalorder %s35, %s36
      %p50 = scmp.eq.s32.totalorder %s28, 1
      %p51 = por %p49, %p50
      %p53 = scmp.ne.s32.totalorder %s36, %s52
      %p54 = scmp.eq.s32.totalorder %s28, 0
      %p55 = por %p53, %p54
      %s56 = ssub.s32 %s22, %s29
      %p57 = scmp.eq.s32.totalorder %s56, 0
      %s59 = sadd.s32 %s58, 1
      %s60 = scalar_select %p57, %s58, %s59
      %p63 = pneg %p57
      %p64 = scmp.eq.s32.totalorder %s22, 1
      %p65 = por %p63, %p64
      %p66 = scmp.ne.s32.totalorder %s58, %s61
      %p67 = scmp.eq.s32.totalorder %s22, 0
      %p68 = por %p66, %p67
      %p69 = scmp.ne.s32.totalorder %s58, %s61
      %p70 = scmp.eq.s32.totalorder %s27, 1
      %p71 = por %p69, %p70
      %p72 = scmp.ne.s32.totalorder %s61, %s62
      %p73 = scmp.eq.s32.totalorder %s27, 0
      %p74 = por %p72, %p73
      %p75 = scmp.ne.s32.totalorder %s61, %s62
      %p76 = scmp.eq.s32.totalorder %s28, 1
      %p77 = por %p75, %p76
      %p79 = scmp.ne.s32.totalorder %s62, %s78
      %p80 = scmp.eq.s32.totalorder %s28, 0
      %p81 = por %p79, %p80
      %s82 = ssub.s32 %s22, %s29
      %p83 = scmp.eq.s32.totalorder %s82, 0
      %s85 = sadd.s32 %s84, 1
      %s86 = scalar_select %p83, %s84, %s85
      %p89 = pneg %p83
      %p90 = scmp.eq.s32.totalorder %s22, 1
      %p91 = por %p89, %p90
      %p92 = scmp.ne.s32.totalorder %s84, %s87
      %p93 = scmp.eq.s32.totalorder %s22, 0
      %p94 = por %p92, %p93
      %p95 = scmp.ne.s32.totalorder %s84, %s87
      %p96 = scmp.eq.s32.totalorder %s27, 1
      %p97 = por %p95, %p96
      %p98 = scmp.ne.s32.totalorder %s87, %s88
      %p99 = scmp.eq.s32.totalorder %s27, 0
      %p100 = por %p98, %p99
      %p101 = scmp.ne.s32.totalorder %s87, %s88
      %p102 = scmp.eq.s32.totalorder %s28, 1
      %p103 = por %p101, %p102
      %p105 = scmp.ne.s32.totalorder %s88, %s104
      %p106 = scmp.eq.s32.totalorder %s28, 0
      %p107 = por %p105, %p106
      %s108 = ssub.s32 %s22, %s29
      %p109 = scmp.eq.s32.totalorder %s108, 0
      %s111 = sadd.s32 %s110, 1
      %s112 = scalar_select %p109, %s110, %s111
      %p115 = pneg %p109
      %p116 = scmp.eq.s32.totalorder %s22, 1
      %p117 = por %p115, %p116
      %p118 = scmp.ne.s32.totalorder %s110, %s113
      %p119 = scmp.eq.s32.totalorder %s22, 0
      %p120 = por %p118, %p119
      %p121 = scmp.ne.s32.totalorder %s110, %s113
      %p122 = scmp.eq.s32.totalorder %s27, 1
      %p123 = por %p121, %p122
      %p124 = scmp.ne.s32.totalorder %s113, %s114
      %p125 = scmp.eq.s32.totalorder %s27, 0
      %p126 = por %p124, %p125
      %p127 = scmp.ne.s32.totalorder %s113, %s114
      %p128 = scmp.eq.s32.totalorder %s28, 1
      %p129 = por %p127, %p128
      %p131 = scmp.ne.s32.totalorder %s114, %s130
      %p132 = scmp.eq.s32.totalorder %s28, 0
      %p133 = por %p131, %p132
      %p134 = scmp.le.s32.totalorder 1, %s22
      %p135 = scmp.lt.s32.totalorder %s22, 3
      %p136 = pnand %p134, %p135
      %p137 = pneg %p136
      // Predicated region
      $region9: #{fn.1} parent=5 // pred_check
        _
      $region10: #{fn.1} parent=5 // pred_check_branch
        %139 = sbr.rel (%p136) target = $region12
      $region11: #{fn.1} parent=5 // pred_region
        %s140 = ssub.s32 %s22, 1
      $region12: #{fn.1} parent=5 // pred_fallthru
        _
      %p141 = scmp.lt.s32.totalorder %s22, 2
      // Predicated region
      $region13: #{fn.1} parent=5 // pred_check
        %p142 = pneg %p141
      $region14: #{fn.1} parent=5 // pred_check_branch
        %144 = sbr.rel (%p142) target = $region16
      $region15: #{fn.1} parent=5 // pred_region
        // Predicated region
        $region17: #{fn.1} parent=15 // pred_check
          %p145 = pneg %p42
        $region18: #{fn.1} parent=15 // pred_check_branch
          %147 = sbr.rel (%p145) target = $region20
        $region19: #{fn.1} parent=15 // pred_region
          %s148 = sand.u32 %s32, 1
          %s149 = scalar_lea.sflag [#allocation3], %s148
          %s150 = sand.u32 %s32, 1
          %s151 = smul.addr %s150, 8
          %s152 = scalar_lea.vmem [#allocation2], %s151
          %154 = vsyncadd %s149, 0
          %s155 = smul.addr %s22, 8
          %s156 = scalar_lea.hbm %s0, %s155
          %s158 = sshll.u32 %s156, 4
          %s159 = int_to_ptr.hbm [resolvable:$true] %s158
          %s160 = sshll.u32 %s152, 4
          %s161 = int_to_ptr.vmem [resolvable:$true] %s160
          %163 = dma.hbm_to_vmem [thread:$0]  %s159, 128, %s161, %s149
        $region20: #{fn.1} parent=15 // pred_fallthru
          _
        // Predicated region
        $region21: #{fn.1} parent=15 // pred_check
          %p164 = pneg %p68
        $region22: #{fn.1} parent=15 // pred_check_branch
          %166 = sbr.rel (%p164) target = $region24
        $region23: #{fn.1} parent=15 // pred_region
          %s167 = sand.u32 %s58, 1
          %s168 = scalar_lea.sflag [#allocation6], %s167
          %s169 = sand.u32 %s58, 1
          %s170 = smul.addr %s169, 8
          %s171 = scalar_lea.vmem [#allocation5], %s170
          %173 = vsyncadd %s168, 0
          %s174 = smul.addr %s22, 8
          %s175 = scalar_lea.hbm %s1, %s174
          %s177 = sshll.u32 %s175, 4
          %s178 = int_to_ptr.hbm [resolvable:$true] %s177
          %s179 = sshll.u32 %s171, 4
          %s180 = int_to_ptr.vmem [resolvable:$true] %s179
          %182 = dma.hbm_to_vmem [thread:$0]  %s178, 128, %s180, %s168
        $region24: #{fn.1} parent=15 // pred_fallthru
          _
      $region16: #{fn.1} parent=5 // pred_fallthru
        _
      %p183 = scmp.le.s32.totalorder 1, %s22
      %p184 = scmp.lt.s32.totalorder %s22, 3
      %p185 = pnand %p183, %p184
      %p186 = pneg %p185
      // Predicated region
      $region25: #{fn.1} parent=5 // pred_check
        _
      $region26: #{fn.1} parent=5 // pred_check_branch
        %188 = sbr.rel (%p185) target = $region28
      $region27: #{fn.1} parent=5 // pred_region
        %s189 = ssub.s32 %s22, 1
        %s190 = sand.u32 %s35, 1
        %s191 = scalar_lea.sflag [#allocation3], %s190
        %s192 = sand.u32 %s35, 1
        %s193 = smul.addr %s192, 8
        %s194 = scalar_lea.vmem [#allocation2], %s193
        // Predicated region
        $region29: #{fn.1} parent=27 // pred_check
          %p195 = pneg %p48
        $region30: #{fn.1} parent=27 // pred_check_branch
          %197 = sbr.rel (%p195) target = $region32
        $region31: #{fn.1} parent=27 // pred_region
          %199 = dma.done %s191, 128
        $region32: #{fn.1} parent=27 // pred_fallthru
          _
        %s200 = sand.u32 %s61, 1
        %s201 = scalar_lea.sflag [#allocation6], %s200
        %s202 = sand.u32 %s61, 1
        %s203 = smul.addr %s202, 8
        %s204 = scalar_lea.vmem [#allocation5], %s203
        // Predicated region
        $region33: #{fn.1} parent=27 // pred_check
          %p205 = pneg %p74
        $region34: #{fn.1} parent=27 // pred_check_branch
          %207 = sbr.rel (%p205) target = $region36
        $region35: #{fn.1} parent=27 // pred_region
          %209 = dma.done %s201, 128
        $region36: #{fn.1} parent=27 // pred_fallthru
          _
        %s210 = sand.u32 %s35, 1
        %s211 = scalar_lea.sflag [#allocation3], %s210
        %s212 = sand.u32 %s35, 1
        %s213 = smul.addr %s212, 8
        %s214 = scalar_lea.vmem [#allocation2], %s213
        %p215 = pneg %p48
        %p216 = pneg %p45
        %s217 = sand.u32 %s61, 1
        %s218 = scalar_lea.sflag [#allocation6], %s217
        %s219 = sand.u32 %s61, 1
        %s220 = smul.addr %s219, 8
        %s221 = scalar_lea.vmem [#allocation5], %s220
        %p222 = pneg %p74
        %p223 = pneg %p71
        %p224 = pneg %p100
        %p225 = pneg %p97
        %s226 = sand.u32 %s87, 1
        %s227 = scalar_lea.sflag [#allocation4], %s226
        %s228 = sand.u32 %s87, 1
        %s229 = smul.addr %s228, 8
        %s230 = scalar_lea.vmem [#allocation7], %s229
        %p231 = pneg %p126
        %p232 = pneg %p123
        %s233 = sand.u32 %s113, 1
        %s234 = scalar_lea.sflag [#allocation9], %s233
        %s235 = sand.u32 %s113, 1
        %s236 = smul.addr %s235, 8
        %s237 = scalar_lea.vmem [#allocation8], %s236
        %v238 = vld [vmem:[%s194] sm:$0xff]
        %vm239 = vcmask 261120
        %240 = vst.msk [vmem:[%s230] sm:$0xff] %vm239, %v238
        %v241 = vld [vmem:[%s204] sm:$0xff]
        %242 = vst.msk [vmem:[%s237] sm:$0xff] %vm239, %v241
        %s243 = sand.u32 %s87, 1
        %s244 = scalar_lea.sflag [#allocation4], %s243
        %s245 = sand.u32 %s87, 1
        %s246 = smul.addr %s245, 8
        %s247 = scalar_lea.vmem [#allocation7], %s246
        %s248 = sand.u32 %s113, 1
        %s249 = scalar_lea.sflag [#allocation9], %s248
        %s250 = sand.u32 %s113, 1
        %s251 = smul.addr %s250, 8
        %s252 = scalar_lea.vmem [#allocation8], %s251
        // Predicated region
        $region37: #{fn.1} parent=27 // pred_check
          %p253 = pneg %p97
        $region38: #{fn.1} parent=27 // pred_check_branch
          %255 = sbr.rel (%p253) target = $region40
        $region39: #{fn.1} parent=27 // pred_region
          %257 = vsyncadd %s244, 0
          %s258 = smul.addr %s27, 8
          %s259 = scalar_lea.hbm %s2, %s258
          %s261 = sshll.u32 %s247, 4
          %s262 = int_to_ptr.vmem [resolvable:$true] %s261
          %s263 = sshll.u32 %s259, 4
          %s264 = int_to_ptr.hbm [resolvable:$true] %s263
          %266 = dma.vmem_to_hbm [thread:$0]  %s262, 128, %s264, %s244
        $region40: #{fn.1} parent=27 // pred_fallthru
          _
        // Predicated region
        $region41: #{fn.1} parent=27 // pred_check
          %p267 = pneg %p123
        $region42: #{fn.1} parent=27 // pred_check_branch
          %269 = sbr.rel (%p267) target = $region44
        $region43: #{fn.1} parent=27 // pred_region
          %271 = vsyncadd %s249, 0
          %s272 = smul.addr %s27, 8
          %s273 = scalar_lea.hbm %s3, %s272
          %s275 = sshll.u32 %s252, 4
          %s276 = int_to_ptr.vmem [resolvable:$true] %s275
          %s277 = sshll.u32 %s273, 4
          %s278 = int_to_ptr.hbm [resolvable:$true] %s277
          %280 = dma.vmem_to_hbm [thread:$0]  %s276, 128, %s278, %s249
        $region44: #{fn.1} parent=27 // pred_fallthru
          _
      $region28: #{fn.1} parent=5 // pred_fallthru
        _
      %p281 = scmp.le.s32.totalorder 2, %s22
      // Predicated region
      $region45: #{fn.1} parent=5 // pred_check
        %p282 = pneg %p281
      $region46: #{fn.1} parent=5 // pred_check_branch
        %284 = sbr.rel (%p282) target = $region48
      $region47: #{fn.1} parent=5 // pred_region
        %s285 = ssub.s32 %s22, 2
        // Predicated region
        $region49: #{fn.1} parent=47 // pred_check
          %p286 = pneg %p103
        $region50: #{fn.1} parent=47 // pred_check_branch
          %288 = sbr.rel (%p286) target = $region52
        $region51: #{fn.1} parent=47 // pred_region
          %s289 = sand.u32 %s88, 1
          %s290 = scalar_lea.sflag [#allocation4], %s289
          %s291 = sand.u32 %s88, 1
          %s292 = smul.addr %s291, 8
          %s293 = scalar_lea.vmem [#allocation7], %s292
          %295 = dma.done %s290, 128
        $region52: #{fn.1} parent=47 // pred_fallthru
          _
        // Predicated region
        $region53: #{fn.1} parent=47 // pred_check
          %p296 = pneg %p129
        $region54: #{fn.1} parent=47 // pred_check_branch
          %298 = sbr.rel (%p296) target = $region56
        $region55: #{fn.1} parent=47 // pred_region
          %s299 = sand.u32 %s114, 1
          %s300 = scalar_lea.sflag [#allocation9], %s299
          %s301 = sand.u32 %s114, 1
          %s302 = smul.addr %s301, 8
          %s303 = scalar_lea.vmem [#allocation8], %s302
          %305 = dma.done %s300, 128
        $region56: #{fn.1} parent=47 // pred_fallthru
          _
      $region48: #{fn.1} parent=5 // pred_fallthru
        _
    $region6: #{fn.1} parent=1 // loop_footer
      %s26 = sadd.s32 1, %s22
    $region7: #{fn.1} parent=1 // loop_footer_branch
      %21 = sbr.rel target = $region3
    $region8: #{fn.1} parent=1 // loop_exit
      _
    %306 = vsyncpa [#allocation3], 1
    %s307 = scalar_lea.sflag [#allocation3], 1
    %308 = vsyncpa %s307, 1
    %309 = vsyncpa [#allocation6], 1
    %s310 = scalar_lea.sflag [#allocation6], 1
    %311 = vsyncpa %s310, 1
    %312 = vsyncpa [#allocation4], 1
    %s313 = scalar_lea.sflag [#allocation4], 1
    %314 = vsyncpa %s313, 1
    %315 = vsyncpa [#allocation9], 1
    %s316 = scalar_lea.sflag [#allocation9], 1
    %317 = vsyncpa %s316, 1

</llo_original>
